<compile_context>
chip_gen: v7x
topology: tpu7x:2x2x1
jax: 0.10.0
libtpu: 0.0.40
codegen_flags: <defaults>
</compile_context>

<pallas_src>
import functools

import jax
import jax.numpy as jnp
from jax.experimental import pallas as pl
from jax.experimental.pallas import tpu as pltpu

EPS = 1e-3


def _conv1x1_bn_kernel(x_ref, w_ref, gb_ref, o_ref, *, inv_m):
    # x_ref: (Cin, M); w_ref: (cb, Cin); gb_ref: (cb, 2); o_ref: (cb, M)
    # 1x1 conv == matmul on the MXU (f32 accumulate).
    y = jnp.dot(w_ref[...], x_ref[...], preferred_element_type=jnp.float32)  # (cb, M)

    # Per-channel batch statistics over the pixel axis (XLU reductions; Mosaic
    # masks the lanes beyond the logical M=196, so no zero-padding is needed).
    mean = jnp.sum(y, axis=-1, keepdims=True) * inv_m                         # (cb, 1)
    yc = y - mean                                                             # centered
    var = jnp.sum(yc * yc, axis=-1, keepdims=True) * inv_m                    # (cb, 1)
    inv_std = jax.lax.rsqrt(var + EPS)                                        # EUP

    # Fold BN into one FMA on the centered activations.
    a = gb_ref[:, 0:1] * inv_std                                              # gamma/std
    b = gb_ref[:, 1:2]                                                        # beta
    o_ref[...] = (yc * a + b).astype(o_ref.dtype)


@functools.partial(jax.jit, static_argnames=("cout_blocks",))
def conv_bn_forward(x_nchw, conv_w, gamma, beta, *, cout_blocks=1):
    """x_nchw: [N, Cin, H, W], conv_w: [Cout, Cin, 1, 1], gamma/beta: [Cout]."""
    N, Cin, H, W = x_nchw.shape
    Cout = conv_w.shape[0]
    M = N * H * W

    if Cout % cout_blocks != 0 or cout_blocks < 1:
        cout_blocks = 1
    cb = Cout // cout_blocks

    # Glue (cheap): for N == 1 the NCHW -> (Cin, M) view is a pure reshape.
    if N == 1:
        xm = x_nchw.reshape(Cin, M)
    else:
        xm = jnp.transpose(x_nchw, (1, 0, 2, 3)).reshape(Cin, M)
    wm = conv_w[:, :, 0, 0]                                          # (Cout, Cin)
    gb = jnp.stack(
        [gamma.astype(jnp.float32), beta.astype(jnp.float32)], axis=1
    )                                                                # (Cout, 2)

    kernel = functools.partial(_conv1x1_bn_kernel, inv_m=1.0 / M)

    ym = pl.pallas_call(
        kernel,
        out_shape=jax.ShapeDtypeStruct((Cout, M), jnp.float32),
        grid=(cout_blocks,),  # 1 block normally; 2 Cout halves on v7x (2 TCs)
        in_specs=[
            pl.BlockSpec((Cin, M), lambda i: (0, 0)),
            pl.BlockSpec((cb, Cin), lambda i: (i, 0)),
            pl.BlockSpec((cb, 2), lambda i: (i, 0)),
        ],
        out_specs=pl.BlockSpec((cb, M), lambda i: (i, 0)),
        compiler_params=pltpu.CompilerParams(
            dimension_semantics=(
                ("parallel",) if cout_blocks > 1 else ("arbitrary",)
            )
        ),
        cost_estimate=pl.CostEstimate(
            flops=2 * M * Cin * Cout + 8 * M * Cout,
            transcendentals=Cout,
            bytes_accessed=4 * (Cin * M + Cout * Cin + 2 * Cout + Cout * M),
        ),
    )(xm, wm, gb)

    # (Cout, M) is already channel-major -> NCHW via pure reshape for N == 1.
    if N == 1:
        return ym.reshape(1, Cout, H, W)
    return jnp.transpose(ym.reshape(Cout, N, H, W), (1, 0, 2, 3))


def _default_cout_blocks():
    """Use a 2-way Cout split only on v7x-class chips (2 TensorCores/chip)."""
    try:
        kind = jax.devices()[0].device_kind.lower()
    except Exception:
        return 1
    return 2 if "v7" in kind else 1


if __name__ == "__main__":
    key = jax.random.PRNGKey(0)
    k_x, k_w, k_g, k_b = jax.random.split(key, 4)

    # Shapes implied by the module: input [1, 40, 14, 14]
    x = jax.random.normal(k_x, (1, 40, 14, 14), dtype=jnp.float32)
    conv_w = jax.random.normal(k_w, (240, 40, 1, 1), dtype=jnp.float32) * 0.1
    gamma = 1.0 + 0.1 * jax.random.normal(k_g, (240,), dtype=jnp.float32)
    beta = 0.1 * jax.random.normal(k_b, (240,), dtype=jnp.float32)

    out = conv_bn_forward(
        x, conv_w, gamma, beta, cout_blocks=_default_cout_blocks()
    )
    jax.block_until_ready(out)

    # Pure-JAX reference of the same math (conv1x1 + training-mode BN).
    # TODO(synk): running_mean/var buffer updates (momentum=0.01) are a training
    # side effect not reflected in the returned tensor, so they are not modeled.
    xm_ref = jnp.transpose(x, (0, 2, 3, 1)).reshape(-1, 40)
    y_ref = xm_ref @ conv_w[:, :, 0, 0].T
    mu = y_ref.mean(axis=0, keepdims=True)
    var = ((y_ref - mu) ** 2).mean(axis=0, keepdims=True)
    ref = (y_ref - mu) / jnp.sqrt(var + EPS) * gamma + beta
    ref = jnp.transpose(ref.reshape(1, 14, 14, 240), (0, 3, 1, 2))

    assert out.shape == (1, 240, 14, 14)
    err = float(jnp.max(jnp.abs(out - ref)))
    assert err < 1e-3, err

    print("KERNEL_OK")
</pallas_src>

<mosaic_0001>
module attributes {stable_mosaic.version = 11 : i64} {
  func.func @_conv1x1_bn_kernel(%arg0: i32, %arg1: memref<40x196xf32, #tpu.memory_space<vmem>>, %arg2: memref<240x40xf32, #tpu.memory_space<vmem>>, %arg3: memref<240x2xf32, #tpu.memory_space<vmem>>, %arg4: memref<240x196xf32, #tpu.memory_space<vmem>>) attributes {dimension_semantics = [#tpu.dimension_semantics<arbitrary>], iteration_bounds = array<i64: 1>, scalar_prefetch = 0 : i64, scratch_operands = 0 : i64, tpu.core_type = #tpu.core_type<tc>, window_params = [{pipeline_mode = #tpu.pipeline_mode<synchronous>, transform_indices = @transform_0, window_bounds = array<i64: 40, 196>}, {transform_indices = @transform_1, window_bounds = array<i64: 240, 40>}, {transform_indices = @transform_2, window_bounds = array<i64: 240, 2>}, {transform_indices = @transform_3, window_bounds = array<i64: 240, 196>}]} {
    %c0 = arith.constant 0 : index
    %c0_0 = arith.constant 0 : index
    %0 = vector.load %arg2[%c0, %c0_0] : memref<240x40xf32, #tpu.memory_space<vmem>>, vector<240x40xf32>
    %c0_1 = arith.constant 0 : index
    %c0_2 = arith.constant 0 : index
    %1 = vector.load %arg1[%c0_1, %c0_2] : memref<40x196xf32, #tpu.memory_space<vmem>>, vector<40x196xf32>
    %cst = arith.constant dense<0.000000e+00> : vector<240x196xf32>
    %2 = tpu.matmul %0, %1, %cst {dimension_numbers = #tpu.dot_dimension_numbers<[1], [0], [0], [1], [0, 0, 1, 1], [], []>} : vector<240x40xf32>, vector<40x196xf32>, vector<240x196xf32> -> vector<240x196xf32>
    %cst_3 = arith.constant dense<0.000000e+00> : vector<240xf32>
    %3 = vector.multi_reduction <add>, %2, %cst_3 [1] : vector<240x196xf32> to vector<240xf32>
    %4 = vector.shape_cast %3 : vector<240xf32> to vector<240x1xf32>
    %cst_4 = arith.constant 0.00510204071 : f32
    %5 = vector.broadcast %cst_4 : f32 to vector<240x1xf32>
    %6 = arith.mulf %4, %5 : vector<240x1xf32>
    %7 = vector.broadcast %6 : vector<240x1xf32> to vector<240x196xf32>
    %8 = arith.subf %2, %7 : vector<240x196xf32>
    %9 = arith.mulf %8, %8 : vector<240x196xf32>
    %cst_5 = arith.constant dense<0.000000e+00> : vector<240xf32>
    %10 = vector.multi_reduction <add>, %9, %cst_5 [1] : vector<240x196xf32> to vector<240xf32>
    %11 = vector.shape_cast %10 : vector<240xf32> to vector<240x1xf32>
    %cst_6 = arith.constant 0.00510204071 : f32
    %12 = vector.broadcast %cst_6 : f32 to vector<240x1xf32>
    %13 = arith.mulf %11, %12 : vector<240x1xf32>
    %cst_7 = arith.constant 1.000000e-03 : f32
    %14 = vector.broadcast %cst_7 : f32 to vector<240x1xf32>
    %15 = arith.addf %13, %14 : vector<240x1xf32>
    %16 = math.rsqrt %15 : vector<240x1xf32>
    %c0_8 = arith.constant 0 : index
    %c0_9 = arith.constant 0 : index
    %17 = vector.load %arg3[%c0_8, %c0_9] : memref<240x2xf32, #tpu.memory_space<vmem>>, vector<240x1xf32>
    %18 = arith.mulf %17, %16 : vector<240x1xf32>
    %c0_10 = arith.constant 0 : index
    %c1 = arith.constant 1 : index
    %19 = vector.load %arg3[%c0_10, %c1] : memref<240x2xf32, #tpu.memory_space<vmem>>, vector<240x1xf32>
    %20 = vector.broadcast %18 : vector<240x1xf32> to vector<240x196xf32>
    %21 = arith.mulf %8, %20 : vector<240x196xf32>
    %22 = vector.broadcast %19 : vector<240x1xf32> to vector<240x196xf32>
    %23 = arith.addf %21, %22 : vector<240x196xf32>
    %c0_11 = arith.constant 0 : index
    %c0_12 = arith.constant 0 : index
    %24 = vector.load %arg4[%c0_11, %c0_12] : memref<240x196xf32, #tpu.memory_space<vmem>>, vector<240x196xf32>
    tpu.vector_store %arg4[%c0_11, %c0_12], %23 {strides = array<i32>} : memref<240x196xf32, #tpu.memory_space<vmem>>, vector<240x196xf32>,
    return
  }
  func.func @transform_0(%arg0: i32) -> (i32, i32) {
    %c0_i32 = arith.constant 0 : i32
    %c0_i32_0 = arith.constant 0 : i32
    %c0_i32_1 = arith.constant 0 : i32
    return %c0_i32, %c0_i32_0 : i32, i32
  }
  func.func @transform_1(%arg0: i32) -> (i32, i32) {
    %c0_i32 = arith.constant 0 : i32
    %c0_i32_0 = arith.constant 0 : i32
    return %arg0, %c0_i32 : i32, i32
  }
  func.func @transform_2(%arg0: i32) -> (i32, i32) {
    %c0_i32 = arith.constant 0 : i32
    %c0_i32_0 = arith.constant 0 : i32
    return %arg0, %c0_i32 : i32, i32
  }
  func.func @transform_3(%arg0: i32) -> (i32, i32) {
    %c0_i32 = arith.constant 0 : i32
    %c0_i32_0 = arith.constant 0 : i32
    return %arg0, %c0_i32 : i32, i32
  }
}

</mosaic_0001>

<llo_original>
// kernel: conv_bn_forward.1
$region0: #{conv_bn_forward.1}
  #allocation0 [shape = 'u32[]', space=smem, size = 0x4, offset = 0x4, fixed_abs, tag = 'smem constant byte address 0x4 - core index']
  #allocation1 [shape = 'u32[144,128]{1,0:T(1,128)}', space=vmem, size = 0x12000, scoped, tag = 'internal scratch']
  %s0 = inlined_call_operand.vmem [shape: f32[40,196], index: 0, kind: input, shape index: {}]
  %s1 = inlined_call_operand.vmem [shape: f32[240,40], index: 1, kind: input, shape index: {}]
  %s2 = inlined_call_operand.vmem [shape: f32[240,2], index: 2, kind: input, shape index: {}]
  %s3 = inlined_call_operand.vmem [shape: f32[240,196], index: 3, kind: output, shape index: {}]
  %s4 = sld [smem:[#allocation0]]
  $region22: #{conv_bn_forward.1} parent=0
    _
  %s6 = ssub.s32 1, %s4
  %s7 = scalar_select 0, %s6, %s4
  // Predicated region
  $region2: #{conv_bn_forward.1} parent=0 // pred_check
    _
  $region3: #{conv_bn_forward.1} parent=0 // pred_check_branch
    %9 = sbr.rel (0) target = $region5
  $region4: #{conv_bn_forward.1} parent=0 // pred_region
    _
  $region5: #{conv_bn_forward.1} parent=0 // pred_fallthru
    _
  // Predicated region
  $region6: #{conv_bn_forward.1} parent=0 // pred_check
    _
  $region7: #{conv_bn_forward.1} parent=0 // pred_check_branch
    %11 = sbr.rel (0) target = $region9
  $region8: #{conv_bn_forward.1} parent=0 // pred_region
    _
  $region9: #{conv_bn_forward.1} parent=0 // pred_fallthru
    _
  // Predicated region
  $region10: #{conv_bn_forward.1} parent=0 // pred_check
    _
  $region11: #{conv_bn_forward.1} parent=0 // pred_check_branch
    %13 = sbr.rel (0) target = $region13
  $region12: #{conv_bn_forward.1} parent=0 // pred_region
    _
  $region13: #{conv_bn_forward.1} parent=0 // pred_fallthru
    _
  %v14 = vld [vmem:[%s1] sm:$0xff]
  %v15 = vld [vmem:[%s1 + $0x8] sm:$0xff]
  %v16 = vld [vmem:[%s1 + $0x10] sm:$0xff]
  %v17 = vld [vmem:[%s1 + $0x18] sm:$0xff]
  %v18 = vld [vmem:[%s1 + $0x20] sm:$0xff]
  %v19 = vld [vmem:[%s1 + $0x28] sm:$0xff]
  %v20 = vld [vmem:[%s1 + $0x30] sm:$0xff]
  %v21 = vld [vmem:[%s1 + $0x38] sm:$0xff]
  %v22 = vld [vmem:[%s1 + $0x40] sm:$0xff]
  %v23 = vld [vmem:[%s1 + $0x48] sm:$0xff]
  %v24 = vld [vmem:[%s1 + $0x50] sm:$0xff]
  %v25 = vld [vmem:[%s1 + $0x58] sm:$0xff]
  %v26 = vld [vmem:[%s1 + $0x60] sm:$0xff]
  %v27 = vld [vmem:[%s1 + $0x68] sm:$0xff]
  %v28 = vld [vmem:[%s1 + $0x70] sm:$0xff]
  %v29 = vld [vmem:[%s1 + $0x78] sm:$0xff]
  %v30 = vld [vmem:[%s1 + $0x80] sm:$0xff]
  %v31 = vld [vmem:[%s1 + $0x88] sm:$0xff]
  %v32 = vld [vmem:[%s1 + $0x90] sm:$0xff]
  %v33 = vld [vmem:[%s1 + $0x98] sm:$0xff]
  %v34 = vld [vmem:[%s1 + $0xa0] sm:$0xff]
  %v35 = vld [vmem:[%s1 + $0xa8] sm:$0xff]
  %v36 = vld [vmem:[%s1 + $0xb0] sm:$0xff]
  %v37 = vld [vmem:[%s1 + $0xb8] sm:$0xff]
  %v38 = vld [vmem:[%s1 + $0xc0] sm:$0xff]
  %v39 = vld [vmem:[%s1 + $0xc8] sm:$0xff]
  %v40 = vld [vmem:[%s1 + $0xd0] sm:$0xff]
  %v41 = vld [vmem:[%s1 + $0xd8] sm:$0xff]
  %v42 = vld [vmem:[%s1 + $0xe0] sm:$0xff]
  %v43 = vld [vmem:[%s1 + $0xe8] sm:$0xff]
  %v44 = vld [vmem:[%s0] sm:$0xff]
  %v45 = vld [vmem:[%s0 + $0x8] sm:$0xff]
  %v46 = vld [vmem:[%s0 + $0x10] sm:$0xff]
  %v47 = vld [vmem:[%s0 + $0x18] sm:$0xff]
  %v48 = vld [vmem:[%s0 + $0x20] sm:$0xff]
  %v49 = vld [vmem:[%s0 + $0x28] sm:$0xff]
  %v50 = vld [vmem:[%s0 + $0x30] sm:$0xff]
  %v51 = vld [vmem:[%s0 + $0x38] sm:$0xff]
  %v52 = vld [vmem:[%s0 + $0x40] sm:$0xff]
  %v53 = vld [vmem:[%s0 + $0x48] sm:$0xff]
  %vm54 = vcmask 326656
  %v56 = vsel %vm54, %v14, 0
  %v59 = vsel %vm54, %v15, 0
  %v62 = vsel %vm54, %v16, 0
  %v65 = vsel %vm54, %v17, 0
  %v68 = vsel %vm54, %v18, 0
  %v71 = vsel %vm54, %v19, 0
  %v74 = vsel %vm54, %v20, 0
  %v77 = vsel %vm54, %v21, 0
  %v80 = vsel %vm54, %v22, 0
  %v83 = vsel %vm54, %v23, 0
  %v86 = vsel %vm54, %v24, 0
  %v89 = vsel %vm54, %v25, 0
  %v92 = vsel %vm54, %v26, 0
  %v95 = vsel %vm54, %v27, 0
  %v98 = vsel %vm54, %v28, 0
  %v101 = vsel %vm54, %v29, 0
  %v104 = vsel %vm54, %v30, 0
  %v107 = vsel %vm54, %v31, 0
  %v110 = vsel %vm54, %v32, 0
  %v113 = vsel %vm54, %v33, 0
  %v116 = vsel %vm54, %v34, 0
  %v119 = vsel %vm54, %v35, 0
  %v122 = vsel %vm54, %v36, 0
  %v125 = vsel %vm54, %v37, 0
  %v128 = vsel %vm54, %v38, 0
  %v131 = vsel %vm54, %v39, 0
  %v134 = vsel %vm54, %v40, 0
  %v137 = vsel %vm54, %v41, 0
  %v140 = vsel %vm54, %v42, 0
  %v143 = vsel %vm54, %v43, 0
  %145 = vmatprep.subr.mxu0 %v45
  %146 = vmatpush1.msra.mxu0 %v44
  %147 = vmatprep.subr.mxu0 %v47
  %148 = vmatpush1.msra.mxu0 %v46
  %149 = vmatprep.subr.mxu0 %v49
  %150 = vmatpush1.msra.mxu0 %v48
  %151 = vmatprep.subr.mxu0 %v51
  %152 = vmatpush1.msra.mxu0 %v50
  %153 = vmatprep.subr.mxu0 %v53
  %154 = vmatpush1.msra.mxu0 %v52
  %155 = vmatprep.subr.mxu0 0.0
  %156 = vmatpush1.msra.mxu0 0.0
  %157 = vmatprep.subr.mxu0 0.0
  %158 = vmatpush1.msra.mxu0 0.0
  %159 = vmatprep.subr.mxu0 0.0
  %160 = vmatpush1.msra.mxu0 0.0
  %161 = vmatprep.subr.mxu0 0.0
  %162 = vmatpush1.msra.mxu0 0.0
  %163 = vmatprep.subr.mxu0 0.0
  %164 = vmatpush1.msra.mxu0 0.0
  %165 = vmatprep.subr.mxu0 0.0
  %166 = vmatpush1.msra.mxu0 0.0
  %167 = vmatprep.subr.mxu0 0.0
  %168 = vmatpush1.msra.mxu0 0.0
  %169 = vmatprep.subr.mxu0 0.0
  %170 = vmatpush1.msra.mxu0 0.0
  %171 = vmatprep.subr.mxu0 0.0
  %172 = vmatpush1.msra.mxu0 0.0
  %173 = vmatprep.subr.mxu0 0.0
  %174 = vmatpush1.msra.mxu0 0.0
  %175 = vmatprep.subr.mxu0 0.0
  %176 = vmatpush1.msra.mxu0 0.0
  %177 = vmatprep.subr.mxu0 0.0
  %178 = vmatpush1.msra.mxu0 0.0
  %179 = vmatprep.subr.mxu0 0.0
  %180 = vmatpush1.msra.mxu0 0.0
  %181 = vmatprep.subr.mxu0 0.0
  %182 = vmatpush1.msra.mxu0 0.0
  %183 = vmatprep.subr.mxu0 0.0
  %184 = vmatpush1.msra.mxu0 0.0
  %185 = vmatprep.subr.mxu0 0.0
  %186 = vmatpush1.msra.mxu0 0.0
  %187 = vmatprep.subr.mxu0 0.0
  %188 = vmatpush1.msra.mxu0 0.0
  %189 = vmatprep.subr.mxu0 0.0
  %190 = vmatpush1.msra.mxu0 0.0
  %191 = vmatprep.subr.mxu0 0.0
  %192 = vmatpush1.msra.mxu0 0.0
  %193 = vmatprep.subr.mxu0 0.0
  %194 = vmatpush1.msra.mxu0 0.0
  %195 = vmatprep.subr.mxu0 0.0
  %196 = vmatpush1.msra.mxu0 0.0
  %197 = vmatprep.subr.mxu0 0.0
  %198 = vmatpush1.msra.mxu0 0.0
  %199 = vmatprep.subr.mxu0 0.0
  %200 = vmatpush1.msra.mxu0 0.0
  %201 = vmatprep.subr.mxu0 0.0
  %202 = vmatpush1.msra.mxu0 0.0
  %203 = vmatprep.subr.mxu0 0.0
  %204 = vmatpush1.msra.mxu0 0.0
  %205 = vmatprep.subr.mxu0 0.0
  %206 = vmatpush1.msra.mxu0 0.0
  %207 = vmatprep.subr.mxu0 0.0
  %208 = vmatpush1.msra.mxu0 0.0
  %209 = vmatprep.mubr.f32.mxu0 0.0
  %210 = vmatmul.mubr.f32.gmra.mrb[0].mxu0 %v56
  %v211 = vpop.f32.mrb[0].mxu0
  %v212 = vadd.f32 0.0, %v211
  %v213 = vpop.f32.mrb[0].mxu0
  %v214 = vadd.f32 0.0, %v213
  %215 = vmatprep.mubr.f32.mxu0 0.0
  %216 = vmatmul.mubr.f32.gmra.mrb[0].mxu0 %v59
  %v217 = vpop.f32.mrb[0].mxu0
  %v218 = vadd.f32 0.0, %v217
  %v219 = vpop.f32.mrb[0].mxu0
  %v220 = vadd.f32 0.0, %v219
  %221 = vmatprep.mubr.f32.mxu0 0.0
  %222 = vmatmul.mubr.f32.gmra.mrb[0].mxu0 %v62
  %v223 = vpop.f32.mrb[0].mxu0
  %v224 = vadd.f32 0.0, %v223
  %v225 = vpop.f32.mrb[0].mxu0
  %v226 = vadd.f32 0.0, %v225
  %227 = vmatprep.mubr.f32.mxu0 0.0
  %228 = vmatmul.mubr.f32.gmra.mrb[0].mxu0 %v65
  %v229 = vpop.f32.mrb[0].mxu0
  %v230 = vadd.f32 0.0, %v229
  %v231 = vpop.f32.mrb[0].mxu0
  %v232 = vadd.f32 0.0, %v231
  %233 = vmatprep.mubr.f32.mxu0 0.0
  %234 = vmatmul.mubr.f32.gmra.mrb[0].mxu0 %v68
  %v235 = vpop.f32.mrb[0].mxu0
  %v236 = vadd.f32 0.0, %v235
  %v237 = vpop.f32.mrb[0].mxu0
  %v238 = vadd.f32 0.0, %v237
  %239 = vmatprep.mubr.f32.mxu0 0.0
  %240 = vmatmul.mubr.f32.gmra.mrb[0].mxu0 %v71
  %v241 = vpop.f32.mrb[0].mxu0
  %v242 = vadd.f32 0.0, %v241
  %v243 = vpop.f32.mrb[0].mxu0
  %v244 = vadd.f32 0.0, %v243
  %245 = vmatprep.mubr.f32.mxu0 0.0
  %246 = vmatmul.mubr.f32.gmra.mrb[0].mxu0 %v74
  %v247 = vpop.f32.mrb[0].mxu0
  %v248 = vadd.f32 0.0, %v247
  %v249 = vpop.f32.mrb[0].mxu0
  %v250 = vadd.f32 0.0, %v249
  %251 = vmatprep.mubr.f32.mxu0 0.0
  %252 = vmatmul.mubr.f32.gmra.mrb[0].mxu0 %v77
  %v253 = vpop.f32.mrb[0].mxu0
  %v254 = vadd.f32 0.0, %v253
  %v255 = vpop.f32.mrb[0].mxu0
  %v256 = vadd.f32 0.0, %v255
  %257 = vmatprep.mubr.f32.mxu0 0.0
  %258 = vmatmul.mubr.f32.gmra.mrb[0].mxu0 %v80
  %v259 = vpop.f32.mrb[0].mxu0
  %v260 = vadd.f32 0.0, %v259
  %v261 = vpop.f32.mrb[0].mxu0
  %v262 = vadd.f32 0.0, %v261
  %263 = vmatprep.mubr.f32.mxu0 0.0
  %264 = vmatmul.mubr.f32.gmra.mrb[0].mxu0 %v83
  %v265 = vpop.f32.mrb[0].mxu0
  %v266 = vadd.f32 0.0, %v265
  %v267 = vpop.f32.mrb[0].mxu0
  %v268 = vadd.f32 0.0, %v267
  %269 = vmatprep.mubr.f32.mxu0 0.0
  %270 = vmatmul.mubr.f32.gmra.mrb[0].mxu0 %v86
  %v271 = vpop.f32.mrb[0].mxu0
  %v272 = vadd.f32 0.0, %v271
  %v273 = vpop.f32.mrb[0].mxu0
  %v274 = vadd.f32 0.0, %v273
  %275 = vmatprep.mubr.f32.mxu0 0.0
  %276 = vmatmul.mubr.f32.gmra.mrb[0].mxu0 %v89
  %v277 = vpop.f32.mrb[0].mxu0
  %v278 = vadd.f32 0.0, %v277
  %v279 = vpop.f32.mrb[0].mxu0
  %v280 = vadd.f32 0.0, %v279
  %281 = vmatprep.mubr.f32.mxu0 0.0
  %282 = vmatmul.mubr.f32.gmra.mrb[0].mxu0 %v92
  %v283 = vpop.f32.mrb[0].mxu0
  %v284 = vadd.f32 0.0, %v283
  %v285 = vpop.f32.mrb[0].mxu0
  %v286 = vadd.f32 0.0, %v285
  %287 = vmatprep.mubr.f32.mxu0 0.0
  %288 = vmatmul.mubr.f32.gmra.mrb[0].mxu0 %v95
  %v289 = vpop.f32.mrb[0].mxu0
  %v290 = vadd.f32 0.0, %v289
  %v291 = vpop.f32.mrb[0].mxu0
  %v292 = vadd.f32 0.0, %v291
  %293 = vmatprep.mubr.f32.mxu0 0.0
  %294 = vmatmul.mubr.f32.gmra.mrb[0].mxu0 %v98
  %v295 = vpop.f32.mrb[0].mxu0
  %v296 = vadd.f32 0.0, %v295
  %v297 = vpop.f32.mrb[0].mxu0
  %v298 = vadd.f32 0.0, %v297
  %299 = vmatprep.mubr.f32.mxu0 0.0
  %300 = vmatmul.mubr.f32.gmra.mrb[0].mxu0 %v101
  %v301 = vpop.f32.mrb[0].mxu0
  %v302 = vadd.f32 0.0, %v301
  %v303 = vpop.f32.mrb[0].mxu0
  %v304 = vadd.f32 0.0, %v303
  %305 = vmatprep.mubr.f32.mxu0 0.0
  %306 = vmatmul.mubr.f32.gmra.mrb[0].mxu0 %v104
  %v307 = vpop.f32.mrb[0].mxu0
  %v308 = vadd.f32 0.0, %v307
  %v309 = vpop.f32.mrb[0].mxu0
  %v310 = vadd.f32 0.0, %v309
  %311 = vmatprep.mubr.f32.mxu0 0.0
  %312 = vmatmul.mubr.f32.gmra.mrb[0].mxu0 %v107
  %v313 = vpop.f32.mrb[0].mxu0
  %v314 = vadd.f32 0.0, %v313
  %v315 = vpop.f32.mrb[0].mxu0
  %v316 = vadd.f32 0.0, %v315
  %317 = vmatprep.mubr.f32.mxu0 0.0
  %318 = vmatmul.mubr.f32.gmra.mrb[0].mxu0 %v110
  %v319 = vpop.f32.mrb[0].mxu0
  %v320 = vadd.f32 0.0, %v319
  %v321 = vpop.f32.mrb[0].mxu0
  %v322 = vadd.f32 0.0, %v321
  %323 = vmatprep.mubr.f32.mxu0 0.0
  %324 = vmatmul.mubr.f32.gmra.mrb[0].mxu0 %v113
  %v325 = vpop.f32.mrb[0].mxu0
  %v326 = vadd.f32 0.0, %v325
  %v327 = vpop.f32.mrb[0].mxu0
  %v328 = vadd.f32 0.0, %v327
  %329 = vmatprep.mubr.f32.mxu0 0.0
  %330 = vmatmul.mubr.f32.gmra.mrb[0].mxu0 %v116
  %v331 = vpop.f32.mrb[0].mxu0
  %v332 = vadd.f32 0.0, %v331
  %v333 = vpop.f32.mrb[0].mxu0
  %v334 = vadd.f32 0.0, %v333
  %335 = vmatprep.mubr.f32.mxu0 0.0
  %336 = vmatmul.mubr.f32.gmra.mrb[0].mxu0 %v119
  %v337 = vpop.f32.mrb[0].mxu0
  %v338 = vadd.f32 0.0, %v337
  %v339 = vpop.f32.mrb[0].mxu0
  %v340 = vadd.f32 0.0, %v339
  %341 = vmatprep.mubr.f32.mxu0 0.0
  %342 = vmatmul.mubr.f32.gmra.mrb[0].mxu0 %v122
  %v343 = vpop.f32.mrb[0].mxu0
  %v344 = vadd.f32 0.0, %v343
  %v345 = vpop.f32.mrb[0].mxu0
  %v346 = vadd.f32 0.0, %v345
  %347 = vmatprep.mubr.f32.mxu0 0.0
  %348 = vmatmul.mubr.f32.gmra.mrb[0].mxu0 %v125
  %v349 = vpop.f32.mrb[0].mxu0
  %v350 = vadd.f32 0.0, %v349
  %v351 = vpop.f32.mrb[0].mxu0
  %v352 = vadd.f32 0.0, %v351
  %353 = vmatprep.mubr.f32.mxu0 0.0
  %354 = vmatmul.mubr.f32.gmra.mrb[0].mxu0 %v128
  %v355 = vpop.f32.mrb[0].mxu0
  %v356 = vadd.f32 0.0, %v355
  %v357 = vpop.f32.mrb[0].mxu0
  %v358 = vadd.f32 0.0, %v357
  %359 = vmatprep.mubr.f32.mxu0 0.0
  %360 = vmatmul.mubr.f32.gmra.mrb[0].mxu0 %v131
  %v361 = vpop.f32.mrb[0].mxu0
  %v362 = vadd.f32 0.0, %v361
  %v363 = vpop.f32.mrb[0].mxu0
  %v364 = vadd.f32 0.0, %v363
  %365 = vmatprep.mubr.f32.mxu0 0.0
  %366 = vmatmul.mubr.f32.gmra.mrb[0].mxu0 %v134
  %v367 = vpop.f32.mrb[0].mxu0
  %v368 = vadd.f32 0.0, %v367
  %v369 = vpop.f32.mrb[0].mxu0
  %v370 = vadd.f32 0.0, %v369
  %371 = vmatprep.mubr.f32.mxu0 0.0
  %372 = vmatmul.mubr.f32.gmra.mrb[0].mxu0 %v137
  %v373 = vpop.f32.mrb[0].mxu0
  %v374 = vadd.f32 0.0, %v373
  %v375 = vpop.f32.mrb[0].mxu0
  %v376 = vadd.f32 0.0, %v375
  %377 = vmatprep.mubr.f32.mxu0 0.0
  %378 = vmatmul.mubr.f32.gmra.mrb[0].mxu0 %v140
  %v379 = vpop.f32.mrb[0].mxu0
  %v380 = vadd.f32 0.0, %v379
  %v381 = vpop.f32.mrb[0].mxu0
  %v382 = vadd.f32 0.0, %v381
  %383 = vmatprep.mubr.f32.mxu0 0.0
  %384 = vmatmul.mubr.f32.gmra.mrb[0].mxu0 %v143
  %v385 = vpop.f32.mrb[0].mxu0
  %v386 = vadd.f32 0.0, %v385
  %v387 = vpop.f32.mrb[0].mxu0
  %v388 = vadd.f32 0.0, %v387
  %389 = vdwg.mxu0
  %vm390 = vcmask 556032
  %v391 = vsel %vm390, %v214, 0.0
  %v392 = vadd.f32 %v212, %v391
  %393 = vadd.xlane.f32.xlu0 %v392
  %v394 = vpop.xlane.xlu0 %393
  %v395 = vsel %vm390, %v220, 0.0
  %v396 = vadd.f32 %v218, %v395
  %397 = vadd.xlane.f32.xlu0 %v396
  %v398 = vpop.xlane.xlu0 %397
  %v399 = vsel %vm390, %v226, 0.0
  %v400 = vadd.f32 %v224, %v399
  %401 = vadd.xlane.f32.xlu0 %v400
  %v402 = vpop.xlane.xlu0 %401
  %v403 = vsel %vm390, %v232, 0.0
  %v404 = vadd.f32 %v230, %v403
  %405 = vadd.xlane.f32.xlu0 %v404
  %v406 = vpop.xlane.xlu0 %405
  %v407 = vsel %vm390, %v238, 0.0
  %v408 = vadd.f32 %v236, %v407
  %409 = vadd.xlane.f32.xlu0 %v408
  %v410 = vpop.xlane.xlu0 %409
  %v411 = vsel %vm390, %v244, 0.0
  %v412 = vadd.f32 %v242, %v411
  %413 = vadd.xlane.f32.xlu0 %v412
  %v414 = vpop.xlane.xlu0 %413
  %v415 = vsel %vm390, %v250, 0.0
  %v416 = vadd.f32 %v248, %v415
  %417 = vadd.xlane.f32.xlu0 %v416
  %v418 = vpop.xlane.xlu0 %417
  %v419 = vsel %vm390, %v256, 0.0
  %v420 = vadd.f32 %v254, %v419
  %421 = vadd.xlane.f32.xlu0 %v420
  %v422 = vpop.xlane.xlu0 %421
  %v423 = vsel %vm390, %v262, 0.0
  %v424 = vadd.f32 %v260, %v423
  %425 = vadd.xlane.f32.xlu0 %v424
  %v426 = vpop.xlane.xlu0 %425
  %v427 = vsel %vm390, %v268, 0.0
  %v428 = vadd.f32 %v266, %v427
  %429 = vadd.xlane.f32.xlu0 %v428
  %v430 = vpop.xlane.xlu0 %429
  %v431 = vsel %vm390, %v274, 0.0
  %v432 = vadd.f32 %v272, %v431
  %433 = vadd.xlane.f32.xlu0 %v432
  %v434 = vpop.xlane.xlu0 %433
  %v435 = vsel %vm390, %v280, 0.0
  %v436 = vadd.f32 %v278, %v435
  %437 = vadd.xlane.f32.xlu0 %v436
  %v438 = vpop.xlane.xlu0 %437
  %v439 = vsel %vm390, %v286, 0.0
  %v440 = vadd.f32 %v284, %v439
  %441 = vadd.xlane.f32.xlu0 %v440
  %v442 = vpop.xlane.xlu0 %441
  %v443 = vsel %vm390, %v292, 0.0
  %v444 = vadd.f32 %v290, %v443
  %445 = vadd.xlane.f32.xlu0 %v444
  %v446 = vpop.xlane.xlu0 %445
  %v447 = vsel %vm390, %v298, 0.0
  %v448 = vadd.f32 %v296, %v447
  %449 = vadd.xlane.f32.xlu0 %v448
  %v450 = vpop.xlane.xlu0 %449
  %v451 = vsel %vm390, %v304, 0.0
  %v452 = vadd.f32 %v302, %v451
  %453 = vadd.xlane.f32.xlu0 %v452
  %v454 = vpop.xlane.xlu0 %453
  %v455 = vsel %vm390, %v310, 0.0
  %v456 = vadd.f32 %v308, %v455
  %457 = vadd.xlane.f32.xlu0 %v456
  %v458 = vpop.xlane.xlu0 %457
  %v459 = vsel %vm390, %v316, 0.0
  %v460 = vadd.f32 %v314, %v459
  %461 = vadd.xlane.f32.xlu0 %v460
  %v462 = vpop.xlane.xlu0 %461
  %v463 = vsel %vm390, %v322, 0.0
  %v464 = vadd.f32 %v320, %v463
  %465 = vadd.xlane.f32.xlu0 %v464
  %v466 = vpop.xlane.xlu0 %465
  %v467 = vsel %vm390, %v328, 0.0
  %v468 = vadd.f32 %v326, %v467
  %469 = vadd.xlane.f32.xlu0 %v468
  %v470 = vpop.xlane.xlu0 %469
  %v471 = vsel %vm390, %v334, 0.0
  %v472 = vadd.f32 %v332, %v471
  %473 = vadd.xlane.f32.xlu0 %v472
  %v474 = vpop.xlane.xlu0 %473
  %v475 = vsel %vm390, %v340, 0.0
  %v476 = vadd.f32 %v338, %v475
  %477 = vadd.xlane.f32.xlu0 %v476
  %v478 = vpop.xlane.xlu0 %477
  %v479 = vsel %vm390, %v346, 0.0
  %v480 = vadd.f32 %v344, %v479
  %481 = vadd.xlane.f32.xlu0 %v480
  %v482 = vpop.xlane.xlu0 %481
  %v483 = vsel %vm390, %v352, 0.0
  %v484 = vadd.f32 %v350, %v483
  %485 = vadd.xlane.f32.xlu0 %v484
  %v486 = vpop.xlane.xlu0 %485
  %v487 = vsel %vm390, %v358, 0.0
  %v488 = vadd.f32 %v356, %v487
  %489 = vadd.xlane.f32.xlu0 %v488
  %v490 = vpop.xlane.xlu0 %489
  %v491 = vsel %vm390, %v364, 0.0
  %v492 = vadd.f32 %v362, %v491
  %493 = vadd.xlane.f32.xlu0 %v492
  %v494 = vpop.xlane.xlu0 %493
  %v495 = vsel %vm390, %v370, 0.0
  %v496 = vadd.f32 %v368, %v495
  %497 = vadd.xlane.f32.xlu0 %v496
  %v498 = vpop.xlane.xlu0 %497
  %v499 = vsel %vm390, %v376, 0.0
  %v500 = vadd.f32 %v374, %v499
  %501 = vadd.xlane.f32.xlu0 %v500
  %v502 = vpop.xlane.xlu0 %501
  %v503 = vsel %vm390, %v382, 0.0
  %v504 = vadd.f32 %v380, %v503
  %505 = vadd.xlane.f32.xlu0 %v504
  %v506 = vpop.xlane.xlu0 %505
  %v507 = vsel %vm390, %v388, 0.0
  %v508 = vadd.f32 %v386, %v507
  %509 = vadd.xlane.f32.xlu0 %v508
  %v510 = vpop.xlane.xlu0 %509
  %v511 = vmul.f32 %v394, 0.0051020407
  %v512 = vmul.f32 %v398, 0.0051020407
  %v513 = vmul.f32 %v402, 0.0051020407
  %v514 = vmul.f32 %v406, 0.0051020407
  %v515 = vmul.f32 %v410, 0.0051020407
  %v516 = vmul.f32 %v414, 0.0051020407
  %v517 = vmul.f32 %v418, 0.0051020407
  %v518 = vmul.f32 %v422, 0.0051020407
  %v519 = vmul.f32 %v426, 0.0051020407
  %v520 = vmul.f32 %v430, 0.0051020407
  %v521 = vmul.f32 %v434, 0.0051020407
  %v522 = vmul.f32 %v438, 0.0051020407
  %v523 = vmul.f32 %v442, 0.0051020407
  %v524 = vmul.f32 %v446, 0.0051020407
  %v525 = vmul.f32 %v450, 0.0051020407
  %v526 = vmul.f32 %v454, 0.0051020407
  %v527 = vmul.f32 %v458, 0.0051020407
  %v528 = vmul.f32 %v462, 0.0051020407
  %v529 = vmul.f32 %v466, 0.0051020407
  %v530 = vmul.f32 %v470, 0.0051020407
  %v531 = vmul.f32 %v474, 0.0051020407
  %v532 = vmul.f32 %v478, 0.0051020407
  %v533 = vmul.f32 %v482, 0.0051020407
  %v534 = vmul.f32 %v486, 0.0051020407
  %v535 = vmul.f32 %v490, 0.0051020407
  %v536 = vmul.f32 %v494, 0.0051020407
  %v537 = vmul.f32 %v498, 0.0051020407
  %v538 = vmul.f32 %v502, 0.0051020407
  %v539 = vmul.f32 %v506, 0.0051020407
  %v540 = vmul.f32 %v510, 0.0051020407
  %v541 = vsub.f32 %v212, %v511
  %v542 = vsub.f32 %v214, %v511
  %v543 = vsub.f32 %v218, %v512
  %v544 = vsub.f32 %v220, %v512
  %v545 = vsub.f32 %v224, %v513
  %v546 = vsub.f32 %v226, %v513
  %v547 = vsub.f32 %v230, %v514
  %v548 = vsub.f32 %v232, %v514
  %v549 = vsub.f32 %v236, %v515
  %v550 = vsub.f32 %v238, %v515
  %v551 = vsub.f32 %v242, %v516
  %v552 = vsub.f32 %v244, %v516
  %v553 = vsub.f32 %v248, %v517
  %v554 = vsub.f32 %v250, %v517
  %v555 = vsub.f32 %v254, %v518
  %v556 = vsub.f32 %v256, %v518
  %v557 = vsub.f32 %v260, %v519
  %v558 = vsub.f32 %v262, %v519
  %v559 = vsub.f32 %v266, %v520
  %v560 = vsub.f32 %v268, %v520
  %v561 = vsub.f32 %v272, %v521
  %v562 = vsub.f32 %v274, %v521
  %v563 = vsub.f32 %v278, %v522
  %v564 = vsub.f32 %v280, %v522
  %v565 = vsub.f32 %v284, %v523
  %v566 = vsub.f32 %v286, %v523
  %v567 = vsub.f32 %v290, %v524
  %v568 = vsub.f32 %v292, %v524
  %v569 = vsub.f32 %v296, %v525
  %v570 = vsub.f32 %v298, %v525
  %v571 = vsub.f32 %v302, %v526
  %v572 = vsub.f32 %v304, %v526
  %v573 = vsub.f32 %v308, %v527
  %v574 = vsub.f32 %v310, %v527
  %v575 = vsub.f32 %v314, %v528
  %v576 = vsub.f32 %v316, %v528
  %v577 = vsub.f32 %v320, %v529
  %v578 = vsub.f32 %v322, %v529
  %v579 = vsub.f32 %v326, %v530
  %v580 = vsub.f32 %v328, %v530
  %v581 = vsub.f32 %v332, %v531
  %v582 = vsub.f32 %v334, %v531
  %v583 = vsub.f32 %v338, %v532
  %v584 = vsub.f32 %v340, %v532
  %v585 = vsub.f32 %v344, %v533
  %v586 = vsub.f32 %v346, %v533
  %v587 = vsub.f32 %v350, %v534
  %v588 = vsub.f32 %v352, %v534
  %v589 = vsub.f32 %v356, %v535
  %v590 = vsub.f32 %v358, %v535
  %v591 = vsub.f32 %v362, %v536
  %v592 = vsub.f32 %v364, %v536
  %v593 = vsub.f32 %v368, %v537
  %v594 = vsub.f32 %v370, %v537
  %v595 = vsub.f32 %v374, %v538
  %v596 = vsub.f32 %v376, %v538
  %v597 = vsub.f32 %v380, %v539
  %v598 = vsub.f32 %v382, %v539
  %v599 = vsub.f32 %v386, %v540
  %v600 = vsub.f32 %v388, %v540
  %v601 = vmul.f32 %v541, %v541
  %v602 = vmul.f32 %v542, %v542
  %v603 = vmul.f32 %v543, %v543
  %v604 = vmul.f32 %v544, %v544
  %v605 = vmul.f32 %v545, %v545
  %v606 = vmul.f32 %v546, %v546
  %v607 = vmul.f32 %v547, %v547
  %v608 = vmul.f32 %v548, %v548
  %v609 = vmul.f32 %v549, %v549
  %v610 = vmul.f32 %v550, %v550
  %v611 = vmul.f32 %v551, %v551
  %v612 = vmul.f32 %v552, %v552
  %v613 = vmul.f32 %v553, %v553
  %v614 = vmul.f32 %v554, %v554
  %v615 = vmul.f32 %v555, %v555
  %v616 = vmul.f32 %v556, %v556
  %v617 = vmul.f32 %v557, %v557
  %v618 = vmul.f32 %v558, %v558
  %v619 = vmul.f32 %v559, %v559
  %v620 = vmul.f32 %v560, %v560
  %v621 = vmul.f32 %v561, %v561
  %v622 = vmul.f32 %v562, %v562
  %v623 = vmul.f32 %v563, %v563
  %v624 = vmul.f32 %v564, %v564
  %v625 = vmul.f32 %v565, %v565
  %v626 = vmul.f32 %v566, %v566
  %v627 = vmul.f32 %v567, %v567
  %v628 = vmul.f32 %v568, %v568
  %v629 = vmul.f32 %v569, %v569
  %v630 = vmul.f32 %v570, %v570
  %v631 = vmul.f32 %v571, %v571
  %v632 = vmul.f32 %v572, %v572
  %v633 = vmul.f32 %v573, %v573
  %v634 = vmul.f32 %v574, %v574
  %v635 = vmul.f32 %v575, %v575
  %v636 = vmul.f32 %v576, %v576
  %v637 = vmul.f32 %v577, %v577
  %v638 = vmul.f32 %v578, %v578
  %v639 = vmul.f32 %v579, %v579
  %v640 = vmul.f32 %v580, %v580
  %v641 = vmul.f32 %v581, %v581
  %v642 = vmul.f32 %v582, %v582
  %v643 = vmul.f32 %v583, %v583
  %v644 = vmul.f32 %v584, %v584
  %v645 = vmul.f32 %v585, %v585
  %v646 = vmul.f32 %v586, %v586
  %v647 = vmul.f32 %v587, %v587
  %v648 = vmul.f32 %v588, %v588
  %v649 = vmul.f32 %v589, %v589
  %v650 = vmul.f32 %v590, %v590
  %v651 = vmul.f32 %v591, %v591
  %v652 = vmul.f32 %v592, %v592
  %v653 = vmul.f32 %v593, %v593
  %v654 = vmul.f32 %v594, %v594
  %v655 = vmul.f32 %v595, %v595
  %v656 = vmul.f32 %v596, %v596
  %v657 = vmul.f32 %v597, %v597
  %v658 = vmul.f32 %v598, %v598
  %v659 = vmul.f32 %v599, %v599
  %v660 = vmul.f32 %v600, %v600
  %v661 = vsel %vm390, %v602, 0.0
  %v662 = vadd.f32 %v601, %v661
  %663 = vadd.xlane.f32.xlu0 %v662
  %v664 = vpop.xlane.xlu0 %663
  %v665 = vsel %vm390, %v604, 0.0
  %v666 = vadd.f32 %v603, %v665
  %667 = vadd.xlane.f32.xlu0 %v666
  %v668 = vpop.xlane.xlu0 %667
  %v669 = vsel %vm390, %v606, 0.0
  %v670 = vadd.f32 %v605, %v669
  %671 = vadd.xlane.f32.xlu0 %v670
  %v672 = vpop.xlane.xlu0 %671
  %v673 = vsel %vm390, %v608, 0.0
  %v674 = vadd.f32 %v607, %v673
  %675 = vadd.xlane.f32.xlu0 %v674
  %v676 = vpop.xlane.xlu0 %675
  %v677 = vsel %vm390, %v610, 0.0
  %v678 = vadd.f32 %v609, %v677
  %679 = vadd.xlane.f32.xlu0 %v678
  %v680 = vpop.xlane.xlu0 %679
  %v681 = vsel %vm390, %v612, 0.0
  %v682 = vadd.f32 %v611, %v681
  %683 = vadd.xlane.f32.xlu0 %v682
  %v684 = vpop.xlane.xlu0 %683
  %v685 = vsel %vm390, %v614, 0.0
  %v686 = vadd.f32 %v613, %v685
  %687 = vadd.xlane.f32.xlu0 %v686
  %v688 = vpop.xlane.xlu0 %687
  %v689 = vsel %vm390, %v616, 0.0
  %v690 = vadd.f32 %v615, %v689
  %691 = vadd.xlane.f32.xlu0 %v690
  %v692 = vpop.xlane.xlu0 %691
  %v693 = vsel %vm390, %v618, 0.0
  %v694 = vadd.f32 %v617, %v693
  %695 = vadd.xlane.f32.xlu0 %v694
  %v696 = vpop.xlane.xlu0 %695
  %v697 = vsel %vm390, %v620, 0.0
  %v698 = vadd.f32 %v619, %v697
  %699 = vadd.xlane.f32.xlu0 %v698
  %v700 = vpop.xlane.xlu0 %699
  %v701 = vsel %vm390, %v622, 0.0
  %v702 = vadd.f32 %v621, %v701
  %703 = vadd.xlane.f32.xlu0 %v702
  %v704 = vpop.xlane.xlu0 %703
  %v705 = vsel %vm390, %v624, 0.0
  %v706 = vadd.f32 %v623, %v705
  %707 = vadd.xlane.f32.xlu0 %v706
  %v708 = vpop.xlane.xlu0 %707
  %v709 = vsel %vm390, %v626, 0.0
  %v710 = vadd.f32 %v625, %v709
  %711 = vadd.xlane.f32.xlu0 %v710
  %v712 = vpop.xlane.xlu0 %711
  %v713 = vsel %vm390, %v628, 0.0
  %v714 = vadd.f32 %v627, %v713
  %715 = vadd.xlane.f32.xlu0 %v714
  %v716 = vpop.xlane.xlu0 %715
  %v717 = vsel %vm390, %v630, 0.0
  %v718 = vadd.f32 %v629, %v717
  %719 = vadd.xlane.f32.xlu0 %v718
  %v720 = vpop.xlane.xlu0 %719
  %v721 = vsel %vm390, %v632, 0.0
  %v722 = vadd.f32 %v631, %v721
  %723 = vadd.xlane.f32.xlu0 %v722
  %v724 = vpop.xlane.xlu0 %723
  %v725 = vsel %vm390, %v634, 0.0
  %v726 = vadd.f32 %v633, %v725
  %727 = vadd.xlane.f32.xlu0 %v726
  %v728 = vpop.xlane.xlu0 %727
  %v729 = vsel %vm390, %v636, 0.0
  %v730 = vadd.f32 %v635, %v729
  %731 = vadd.xlane.f32.xlu0 %v730
  %v732 = vpop.xlane.xlu0 %731
  %v733 = vsel %vm390, %v638, 0.0
  %v734 = vadd.f32 %v637, %v733
  %735 = vadd.xlane.f32.xlu0 %v734
  %v736 = vpop.xlane.xlu0 %735
  %v737 = vsel %vm390, %v640, 0.0
  %v738 = vadd.f32 %v639, %v737
  %739 = vadd.xlane.f32.xlu0 %v738
  %v740 = vpop.xlane.xlu0 %739
  %v741 = vsel %vm390, %v642, 0.0
  %v742 = vadd.f32 %v641, %v741
  %743 = vadd.xlane.f32.xlu0 %v742
  %v744 = vpop.xlane.xlu0 %743
  %v745 = vsel %vm390, %v644, 0.0
  %v746 = vadd.f32 %v643, %v745
  %747 = vadd.xlane.f32.xlu0 %v746
  %v748 = vpop.xlane.xlu0 %747
  %v749 = vsel %vm390, %v646, 0.0
  %v750 = vadd.f32 %v645, %v749
  %751 = vadd.xlane.f32.xlu0 %v750
  %v752 = vpop.xlane.xlu0 %751
  %v753 = vsel %vm390, %v648, 0.0
  %v754 = vadd.f32 %v647, %v753
  %755 = vadd.xlane.f32.xlu0 %v754
  %v756 = vpop.xlane.xlu0 %755
  %v757 = vsel %vm390, %v650, 0.0
  %v758 = vadd.f32 %v649, %v757
  %759 = vadd.xlane.f32.xlu0 %v758
  %v760 = vpop.xlane.xlu0 %759
  %v761 = vsel %vm390, %v652, 0.0
  %v762 = vadd.f32 %v651, %v761
  %763 = vadd.xlane.f32.xlu0 %v762
  %v764 = vpop.xlane.xlu0 %763
  %v765 = vsel %vm390, %v654, 0.0
  %v766 = vadd.f32 %v653, %v765
  %767 = vadd.xlane.f32.xlu0 %v766
  %v768 = vpop.xlane.xlu0 %767
  %v769 = vsel %vm390, %v656, 0.0
  %v770 = vadd.f32 %v655, %v769
  %771 = vadd.xlane.f32.xlu0 %v770
  %v772 = vpop.xlane.xlu0 %771
  %v773 = vsel %vm390, %v658, 0.0
  %v774 = vadd.f32 %v657, %v773
  %775 = vadd.xlane.f32.xlu0 %v774
  %v776 = vpop.xlane.xlu0 %775
  %v777 = vsel %vm390, %v660, 0.0
  %v778 = vadd.f32 %v659, %v777
  %779 = vadd.xlane.f32.xlu0 %v778
  %v780 = vpop.xlane.xlu0 %779
  %v781 = vmul.f32 %v664, 0.0051020407
  %v782 = vmul.f32 %v668, 0.0051020407
  %v783 = vmul.f32 %v672, 0.0051020407
  %v784 = vmul.f32 %v676, 0.0051020407
  %v785 = vmul.f32 %v680, 0.0051020407
  %v786 = vmul.f32 %v684, 0.0051020407
  %v787 = vmul.f32 %v688, 0.0051020407
  %v788 = vmul.f32 %v692, 0.0051020407
  %v789 = vmul.f32 %v696, 0.0051020407
  %v790 = vmul.f32 %v700, 0.0051020407
  %v791 = vmul.f32 %v704, 0.0051020407
  %v792 = vmul.f32 %v708, 0.0051020407
  %v793 = vmul.f32 %v712, 0.0051020407
  %v794 = vmul.f32 %v716, 0.0051020407
  %v795 = vmul.f32 %v720, 0.0051020407
  %v796 = vmul.f32 %v724, 0.0051020407
  %v797 = vmul.f32 %v728, 0.0051020407
  %v798 = vmul.f32 %v732, 0.0051020407
  %v799 = vmul.f32 %v736, 0.0051020407
  %v800 = vmul.f32 %v740, 0.0051020407
  %v801 = vmul.f32 %v744, 0.0051020407
  %v802 = vmul.f32 %v748, 0.0051020407
  %v803 = vmul.f32 %v752, 0.0051020407
  %v804 = vmul.f32 %v756, 0.0051020407
  %v805 = vmul.f32 %v760, 0.0051020407
  %v806 = vmul.f32 %v764, 0.0051020407
  %v807 = vmul.f32 %v768, 0.0051020407
  %v808 = vmul.f32 %v772, 0.0051020407
  %v809 = vmul.f32 %v776, 0.0051020407
  %v810 = vmul.f32 %v780, 0.0051020407
  %v811 = vadd.f32 %v781, 0.001
  %v812 = vadd.f32 %v782, 0.001
  %v813 = vadd.f32 %v783, 0.001
  %v814 = vadd.f32 %v784, 0.001
  %v815 = vadd.f32 %v785, 0.001
  %v816 = vadd.f32 %v786, 0.001
  %v817 = vadd.f32 %v787, 0.001
  %v818 = vadd.f32 %v788, 0.001
  %v819 = vadd.f32 %v789, 0.001
  %v820 = vadd.f32 %v790, 0.001
  %v821 = vadd.f32 %v791, 0.001
  %v822 = vadd.f32 %v792, 0.001
  %v823 = vadd.f32 %v793, 0.001
  %v824 = vadd.f32 %v794, 0.001
  %v825 = vadd.f32 %v795, 0.001
  %v826 = vadd.f32 %v796, 0.001
  %v827 = vadd.f32 %v797, 0.001
  %v828 = vadd.f32 %v798, 0.001
  %v829 = vadd.f32 %v799, 0.001
  %v830 = vadd.f32 %v800, 0.001
  %v831 = vadd.f32 %v801, 0.001
  %v832 = vadd.f32 %v802, 0.001
  %v833 = vadd.f32 %v803, 0.001
  %v834 = vadd.f32 %v804, 0.001
  %v835 = vadd.f32 %v805, 0.001
  %v836 = vadd.f32 %v806, 0.001
  %v837 = vadd.f32 %v807, 0.001
  %v838 = vadd.f32 %v808, 0.001
  %v839 = vadd.f32 %v809, 0.001
  %v840 = vadd.f32 %v810, 0.001
  %v841 = vrsqrt.pop %v811
  %v842 = vrsqrt.pop %v812
  %v843 = vrsqrt.pop %v813
  %v844 = vrsqrt.pop %v814
  %v845 = vrsqrt.pop %v815
  %v846 = vrsqrt.pop %v816
  %v847 = vrsqrt.pop %v817
  %v848 = vrsqrt.pop %v818
  %v849 = vrsqrt.pop %v819
  %v850 = vrsqrt.pop %v820
  %v851 = vrsqrt.pop %v821
  %v852 = vrsqrt.pop %v822
  %v853 = vrsqrt.pop %v823
  %v854 = vrsqrt.pop %v824
  %v855 = vrsqrt.pop %v825
  %v856 = vrsqrt.pop %v826
  %v857 = vrsqrt.pop %v827
  %v858 = vrsqrt.pop %v828
  %v859 = vrsqrt.pop %v829
  %v860 = vrsqrt.pop %v830
  %v861 = vrsqrt.pop %v831
  %v862 = vrsqrt.pop %v832
  %v863 = vrsqrt.pop %v833
  %v864 = vrsqrt.pop %v834
  %v865 = vrsqrt.pop %v835
  %v866 = vrsqrt.pop %v836
  %v867 = vrsqrt.pop %v837
  %v868 = vrsqrt.pop %v838
  %v869 = vrsqrt.pop %v839
  %v870 = vrsqrt.pop %v840
  %v871 = vld [vmem:[%s2] sm:$0xff]
  %v872 = vld [vmem:[%s2 + $0x8] sm:$0xff]
  %v873 = vld [vmem:[%s2 + $0x10] sm:$0xff]
  %v874 = vld [vmem:[%s2 + $0x18] sm:$0xff]
  %v875 = vld [vmem:[%s2 + $0x20] sm:$0xff]
  %v876 = vld [vmem:[%s2 + $0x28] sm:$0xff]
  %v877 = vld [vmem:[%s2 + $0x30] sm:$0xff]
  %v878 = vld [vmem:[%s2 + $0x38] sm:$0xff]
  %v879 = vld [vmem:[%s2 + $0x40] sm:$0xff]
  %v880 = vld [vmem:[%s2 + $0x48] sm:$0xff]
  %v881 = vld [vmem:[%s2 + $0x50] sm:$0xff]
  %v882 = vld [vmem:[%s2 + $0x58] sm:$0xff]
  %v883 = vld [vmem:[%s2 + $0x60] sm:$0xff]
  %v884 = vld [vmem:[%s2 + $0x68] sm:$0xff]
  %v885 = vld [vmem:[%s2 + $0x70] sm:$0xff]
  %v886 = vld [vmem:[%s2 + $0x78] sm:$0xff]
  %v887 = vld [vmem:[%s2 + $0x80] sm:$0xff]
  %v888 = vld [vmem:[%s2 + $0x88] sm:$0xff]
  %v889 = vld [vmem:[%s2 + $0x90] sm:$0xff]
  %v890 = vld [vmem:[%s2 + $0x98] sm:$0xff]
  %v891 = vld [vmem:[%s2 + $0xa0] sm:$0xff]
  %v892 = vld [vmem:[%s2 + $0xa8] sm:$0xff]
  %v893 = vld [vmem:[%s2 + $0xb0] sm:$0xff]
  %v894 = vld [vmem:[%s2 + $0xb8] sm:$0xff]
  %v895 = vld [vmem:[%s2 + $0xc0] sm:$0xff]
  %v896 = vld [vmem:[%s2 + $0xc8] sm:$0xff]
  %v897 = vld [vmem:[%s2 + $0xd0] sm:$0xff]
  %v898 = vld [vmem:[%s2 + $0xd8] sm:$0xff]
  %v899 = vld [vmem:[%s2 + $0xe0] sm:$0xff]
  %v900 = vld [vmem:[%s2 + $0xe8] sm:$0xff]
  %v901 = vmul.f32 %v871, %v841
  %v902 = vmul.f32 %v872, %v842
  %v903 = vmul.f32 %v873, %v843
  %v904 = vmul.f32 %v874, %v844
  %v905 = vmul.f32 %v875, %v845
  %v906 = vmul.f32 %v876, %v846
  %v907 = vmul.f32 %v877, %v847
  %v908 = vmul.f32 %v878, %v848
  %v909 = vmul.f32 %v879, %v849
  %v910 = vmul.f32 %v880, %v850
  %v911 = vmul.f32 %v881, %v851
  %v912 = vmul.f32 %v882, %v852
  %v913 = vmul.f32 %v883, %v853
  %v914 = vmul.f32 %v884, %v854
  %v915 = vmul.f32 %v885, %v855
  %v916 = vmul.f32 %v886, %v856
  %v917 = vmul.f32 %v887, %v857
  %v918 = vmul.f32 %v888, %v858
  %v919 = vmul.f32 %v889, %v859
  %v920 = vmul.f32 %v890, %v860
  %v921 = vmul.f32 %v891, %v861
  %v922 = vmul.f32 %v892, %v862
  %v923 = vmul.f32 %v893, %v863
  %v924 = vmul.f32 %v894, %v864
  %v925 = vmul.f32 %v895, %v865
  %v926 = vmul.f32 %v896, %v866
  %v927 = vmul.f32 %v897, %v867
  %v928 = vmul.f32 %v898, %v868
  %v929 = vmul.f32 %v899, %v869
  %v930 = vmul.f32 %v900, %v870
  %932 = vset.pattern.permute.xlu0 0
  %933 = vperm.xlu0 %932, %v901
  %v934 = vpop.permute.xlu0 %933
  %937 = vset.pattern.permute.xlu0 0
  %938 = vperm.xlu0 %937, %v902
  %v939 = vpop.permute.xlu0 %938
  %942 = vset.pattern.permute.xlu0 0
  %943 = vperm.xlu0 %942, %v903
  %v944 = vpop.permute.xlu0 %943
  %947 = vset.pattern.permute.xlu0 0
  %948 = vperm.xlu0 %947, %v904
  %v949 = vpop.permute.xlu0 %948
  %952 = vset.pattern.permute.xlu0 0
  %953 = vperm.xlu0 %952, %v905
  %v954 = vpop.permute.xlu0 %953
  %957 = vset.pattern.permute.xlu0 0
  %958 = vperm.xlu0 %957, %v906
  %v959 = vpop.permute.xlu0 %958
  %962 = vset.pattern.permute.xlu0 0
  %963 = vperm.xlu0 %962, %v907
  %v964 = vpop.permute.xlu0 %963
  %967 = vset.pattern.permute.xlu0 0
  %968 = vperm.xlu0 %967, %v908
  %v969 = vpop.permute.xlu0 %968
  %972 = vset.pattern.permute.xlu0 0
  %973 = vperm.xlu0 %972, %v909
  %v974 = vpop.permute.xlu0 %973
  %977 = vset.pattern.permute.xlu0 0
  %978 = vperm.xlu0 %977, %v910
  %v979 = vpop.permute.xlu0 %978
  %982 = vset.pattern.permute.xlu0 0
  %983 = vperm.xlu0 %982, %v911
  %v984 = vpop.permute.xlu0 %983
  %987 = vset.pattern.permute.xlu0 0
  %988 = vperm.xlu0 %987, %v912
  %v989 = vpop.permute.xlu0 %988
  %992 = vset.pattern.permute.xlu0 0
  %993 = vperm.xlu0 %992, %v913
  %v994 = vpop.permute.xlu0 %993
  %997 = vset.pattern.permute.xlu0 0
  %998 = vperm.xlu0 %997, %v914
  %v999 = vpop.permute.xlu0 %998
  %1002 = vset.pattern.permute.xlu0 0
  %1003 = vperm.xlu0 %1002, %v915
  %v1004 = vpop.permute.xlu0 %1003
  %1007 = vset.pattern.permute.xlu0 0
  %1008 = vperm.xlu0 %1007, %v916
  %v1009 = vpop.permute.xlu0 %1008
  %1012 = vset.pattern.permute.xlu0 0
  %1013 = vperm.xlu0 %1012, %v917
  %v1014 = vpop.permute.xlu0 %1013
  %1017 = vset.pattern.permute.xlu0 0
  %1018 = vperm.xlu0 %1017, %v918
  %v1019 = vpop.permute.xlu0 %1018
  %1022 = vset.pattern.permute.xlu0 0
  %1023 = vperm.xlu0 %1022, %v919
  %v1024 = vpop.permute.xlu0 %1023
  %1027 = vset.pattern.permute.xlu0 0
  %1028 = vperm.xlu0 %1027, %v920
  %v1029 = vpop.permute.xlu0 %1028
  %1032 = vset.pattern.permute.xlu0 0
  %1033 = vperm.xlu0 %1032, %v921
  %v1034 = vpop.permute.xlu0 %1033
  %1037 = vset.pattern.permute.xlu0 0
  %1038 = vperm.xlu0 %1037, %v922
  %v1039 = vpop.permute.xlu0 %1038
  %1042 = vset.pattern.permute.xlu0 0
  %1043 = vperm.xlu0 %1042, %v923
  %v1044 = vpop.permute.xlu0 %1043
  %1047 = vset.pattern.permute.xlu0 0
  %1048 = vperm.xlu0 %1047, %v924
  %v1049 = vpop.permute.xlu0 %1048
  %1052 = vset.pattern.permute.xlu0 0
  %1053 = vperm.xlu0 %1052, %v925
  %v1054 = vpop.permute.xlu0 %1053
  %1057 = vset.pattern.permute.xlu0 0
  %1058 = vperm.xlu0 %1057, %v926
  %v1059 = vpop.permute.xlu0 %1058
  %1062 = vset.pattern.permute.xlu0 0
  %1063 = vperm.xlu0 %1062, %v927
  %v1064 = vpop.permute.xlu0 %1063
  %1067 = vset.pattern.permute.xlu0 0
  %1068 = vperm.xlu0 %1067, %v928
  %v1069 = vpop.permute.xlu0 %1068
  %1072 = vset.pattern.permute.xlu0 0
  %1073 = vperm.xlu0 %1072, %v929
  %v1074 = vpop.permute.xlu0 %1073
  %1077 = vset.pattern.permute.xlu0 0
  %1078 = vperm.xlu0 %1077, %v930
  %v1079 = vpop.permute.xlu0 %1078
  %v1081 = vmul.f32 %v541, %v934
  %v1082 = vmul.f32 %v542, %v934
  %v1083 = vmul.f32 %v543, %v939
  %v1084 = vmul.f32 %v544, %v939
  %v1085 = vmul.f32 %v545, %v944
  %v1086 = vmul.f32 %v546, %v944
  %v1087 = vmul.f32 %v547, %v949
  %v1088 = vmul.f32 %v548, %v949
  %v1089 = vmul.f32 %v549, %v954
  %v1090 = vmul.f32 %v550, %v954
  %v1091 = vmul.f32 %v551, %v959
  %v1092 = vmul.f32 %v552, %v959
  %v1093 = vmul.f32 %v553, %v964
  %v1094 = vmul.f32 %v554, %v964
  %v1095 = vmul.f32 %v555, %v969
  %v1096 = vmul.f32 %v556, %v969
  %v1097 = vmul.f32 %v557, %v974
  %v1098 = vmul.f32 %v558, %v974
  %v1099 = vmul.f32 %v559, %v979
  %v1100 = vmul.f32 %v560, %v979
  %v1101 = vmul.f32 %v561, %v984
  %v1102 = vmul.f32 %v562, %v984
  %v1103 = vmul.f32 %v563, %v989
  %v1104 = vmul.f32 %v564, %v989
  %v1105 = vmul.f32 %v565, %v994
  %v1106 = vmul.f32 %v566, %v994
  %v1107 = vmul.f32 %v567, %v999
  %v1108 = vmul.f32 %v568, %v999
  %v1109 = vmul.f32 %v569, %v1004
  %v1110 = vmul.f32 %v570, %v1004
  %v1111 = vmul.f32 %v571, %v1009
  %v1112 = vmul.f32 %v572, %v1009
  %v1113 = vmul.f32 %v573, %v1014
  %v1114 = vmul.f32 %v574, %v1014
  %v1115 = vmul.f32 %v575, %v1019
  %v1116 = vmul.f32 %v576, %v1019
  %v1117 = vmul.f32 %v577, %v1024
  %v1118 = vmul.f32 %v578, %v1024
  %v1119 = vmul.f32 %v579, %v1029
  %v1120 = vmul.f32 %v580, %v1029
  %v1121 = vmul.f32 %v581, %v1034
  %v1122 = vmul.f32 %v582, %v1034
  %v1123 = vmul.f32 %v583, %v1039
  %v1124 = vmul.f32 %v584, %v1039
  %v1125 = vmul.f32 %v585, %v1044
  %v1126 = vmul.f32 %v586, %v1044
  %v1127 = vmul.f32 %v587, %v1049
  %v1128 = vmul.f32 %v588, %v1049
  %v1129 = vmul.f32 %v589, %v1054
  %v1130 = vmul.f32 %v590, %v1054
  %v1131 = vmul.f32 %v591, %v1059
  %v1132 = vmul.f32 %v592, %v1059
  %v1133 = vmul.f32 %v593, %v1064
  %v1134 = vmul.f32 %v594, %v1064
  %v1135 = vmul.f32 %v595, %v1069
  %v1136 = vmul.f32 %v596, %v1069
  %v1137 = vmul.f32 %v597, %v1074
  %v1138 = vmul.f32 %v598, %v1074
  %v1139 = vmul.f32 %v599, %v1079
  %v1140 = vmul.f32 %v600, %v1079
  %1142 = vset.pattern.permute.xlu0 1
  %1143 = vperm.xlu0 %1142, %v871
  %v1144 = vpop.permute.xlu0 %1143
  %1147 = vset.pattern.permute.xlu0 1
  %1148 = vperm.xlu0 %1147, %v872
  %v1149 = vpop.permute.xlu0 %1148
  %1152 = vset.pattern.permute.xlu0 1
  %1153 = vperm.xlu0 %1152, %v873
  %v1154 = vpop.permute.xlu0 %1153
  %1157 = vset.pattern.permute.xlu0 1
  %1158 = vperm.xlu0 %1157, %v874
  %v1159 = vpop.permute.xlu0 %1158
  %1162 = vset.pattern.permute.xlu0 1
  %1163 = vperm.xlu0 %1162, %v875
  %v1164 = vpop.permute.xlu0 %1163
  %1167 = vset.pattern.permute.xlu0 1
  %1168 = vperm.xlu0 %1167, %v876
  %v1169 = vpop.permute.xlu0 %1168
  %1172 = vset.pattern.permute.xlu0 1
  %1173 = vperm.xlu0 %1172, %v877
  %v1174 = vpop.permute.xlu0 %1173
  %1177 = vset.pattern.permute.xlu0 1
  %1178 = vperm.xlu0 %1177, %v878
  %v1179 = vpop.permute.xlu0 %1178
  %1182 = vset.pattern.permute.xlu0 1
  %1183 = vperm.xlu0 %1182, %v879
  %v1184 = vpop.permute.xlu0 %1183
  %1187 = vset.pattern.permute.xlu0 1
  %1188 = vperm.xlu0 %1187, %v880
  %v1189 = vpop.permute.xlu0 %1188
  %1192 = vset.pattern.permute.xlu0 1
  %1193 = vperm.xlu0 %1192, %v881
  %v1194 = vpop.permute.xlu0 %1193
  %1197 = vset.pattern.permute.xlu0 1
  %1198 = vperm.xlu0 %1197, %v882
  %v1199 = vpop.permute.xlu0 %1198
  %1202 = vset.pattern.permute.xlu0 1
  %1203 = vperm.xlu0 %1202, %v883
  %v1204 = vpop.permute.xlu0 %1203
  %1207 = vset.pattern.permute.xlu0 1
  %1208 = vperm.xlu0 %1207, %v884
  %v1209 = vpop.permute.xlu0 %1208
  %1212 = vset.pattern.permute.xlu0 1
  %1213 = vperm.xlu0 %1212, %v885
  %v1214 = vpop.permute.xlu0 %1213
  %1217 = vset.pattern.permute.xlu0 1
  %1218 = vperm.xlu0 %1217, %v886
  %v1219 = vpop.permute.xlu0 %1218
  %1222 = vset.pattern.permute.xlu0 1
  %1223 = vperm.xlu0 %1222, %v887
  %v1224 = vpop.permute.xlu0 %1223
  %1227 = vset.pattern.permute.xlu0 1
  %1228 = vperm.xlu0 %1227, %v888
  %v1229 = vpop.permute.xlu0 %1228
  %1232 = vset.pattern.permute.xlu0 1
  %1233 = vperm.xlu0 %1232, %v889
  %v1234 = vpop.permute.xlu0 %1233
  %1237 = vset.pattern.permute.xlu0 1
  %1238 = vperm.xlu0 %1237, %v890
  %v1239 = vpop.permute.xlu0 %1238
  %1242 = vset.pattern.permute.xlu0 1
  %1243 = vperm.xlu0 %1242, %v891
  %v1244 = vpop.permute.xlu0 %1243
  %1247 = vset.pattern.permute.xlu0 1
  %1248 = vperm.xlu0 %1247, %v892
  %v1249 = vpop.permute.xlu0 %1248
  %1252 = vset.pattern.permute.xlu0 1
  %1253 = vperm.xlu0 %1252, %v893
  %v1254 = vpop.permute.xlu0 %1253
  %1257 = vset.pattern.permute.xlu0 1
  %1258 = vperm.xlu0 %1257, %v894
  %v1259 = vpop.permute.xlu0 %1258
  %1262 = vset.pattern.permute.xlu0 1
  %1263 = vperm.xlu0 %1262, %v895
  %v1264 = vpop.permute.xlu0 %1263
  %1267 = vset.pattern.permute.xlu0 1
  %1268 = vperm.xlu0 %1267, %v896
  %v1269 = vpop.permute.xlu0 %1268
  %1272 = vset.pattern.permute.xlu0 1
  %1273 = vperm.xlu0 %1272, %v897
  %v1274 = vpop.permute.xlu0 %1273
  %1277 = vset.pattern.permute.xlu0 1
  %1278 = vperm.xlu0 %1277, %v898
  %v1279 = vpop.permute.xlu0 %1278
  %1282 = vset.pattern.permute.xlu0 1
  %1283 = vperm.xlu0 %1282, %v899
  %v1284 = vpop.permute.xlu0 %1283
  %1287 = vset.pattern.permute.xlu0 1
  %1288 = vperm.xlu0 %1287, %v900
  %v1289 = vpop.permute.xlu0 %1288
  %v1291 = vadd.f32 %v1081, %v1144
  %v1292 = vadd.f32 %v1082, %v1144
  %v1293 = vadd.f32 %v1083, %v1149
  %v1294 = vadd.f32 %v1084, %v1149
  %v1295 = vadd.f32 %v1085, %v1154
  %v1296 = vadd.f32 %v1086, %v1154
  %v1297 = vadd.f32 %v1087, %v1159
  %v1298 = vadd.f32 %v1088, %v1159
  %v1299 = vadd.f32 %v1089, %v1164
  %v1300 = vadd.f32 %v1090, %v1164
  %v1301 = vadd.f32 %v1091, %v1169
  %v1302 = vadd.f32 %v1092, %v1169
  %v1303 = vadd.f32 %v1093, %v1174
  %v1304 = vadd.f32 %v1094, %v1174
  %v1305 = vadd.f32 %v1095, %v1179
  %v1306 = vadd.f32 %v1096, %v1179
  %v1307 = vadd.f32 %v1097, %v1184
  %v1308 = vadd.f32 %v1098, %v1184
  %v1309 = vadd.f32 %v1099, %v1189
  %v1310 = vadd.f32 %v1100, %v1189
  %v1311 = vadd.f32 %v1101, %v1194
  %v1312 = vadd.f32 %v1102, %v1194
  %v1313 = vadd.f32 %v1103, %v1199
  %v1314 = vadd.f32 %v1104, %v1199
  %v1315 = vadd.f32 %v1105, %v1204
  %v1316 = vadd.f32 %v1106, %v1204
  %v1317 = vadd.f32 %v1107, %v1209
  %v1318 = vadd.f32 %v1108, %v1209
  %v1319 = vadd.f32 %v1109, %v1214
  %v1320 = vadd.f32 %v1110, %v1214
  %v1321 = vadd.f32 %v1111, %v1219
  %v1322 = vadd.f32 %v1112, %v1219
  %v1323 = vadd.f32 %v1113, %v1224
  %v1324 = vadd.f32 %v1114, %v1224
  %v1325 = vadd.f32 %v1115, %v1229
  %v1326 = vadd.f32 %v1116, %v1229
  %v1327 = vadd.f32 %v1117, %v1234
  %v1328 = vadd.f32 %v1118, %v1234
  %v1329 = vadd.f32 %v1119, %v1239
  %v1330 = vadd.f32 %v1120, %v1239
  %v1331 = vadd.f32 %v1121, %v1244
  %v1332 = vadd.f32 %v1122, %v1244
  %v1333 = vadd.f32 %v1123, %v1249
  %v1334 = vadd.f32 %v1124, %v1249
  %v1335 = vadd.f32 %v1125, %v1254
  %v1336 = vadd.f32 %v1126, %v1254
  %v1337 = vadd.f32 %v1127, %v1259
  %v1338 = vadd.f32 %v1128, %v1259
  %v1339 = vadd.f32 %v1129, %v1264
  %v1340 = vadd.f32 %v1130, %v1264
  %v1341 = vadd.f32 %v1131, %v1269
  %v1342 = vadd.f32 %v1132, %v1269
  %v1343 = vadd.f32 %v1133, %v1274
  %v1344 = vadd.f32 %v1134, %v1274
  %v1345 = vadd.f32 %v1135, %v1279
  %v1346 = vadd.f32 %v1136, %v1279
  %v1347 = vadd.f32 %v1137, %v1284
  %v1348 = vadd.f32 %v1138, %v1284
  %v1349 = vadd.f32 %v1139, %v1289
  %v1350 = vadd.f32 %v1140, %v1289
  %1351 = vst [vmem:[%s3] sm:$0xff] %v1291
  %1352 = vst.msk [vmem:[%s3 + $0x8] sm:$0xff] %vm390, %v1292
  %1353 = vst [vmem:[%s3 + $0x10] sm:$0xff] %v1293
  %1354 = vst.msk [vmem:[%s3 + $0x18] sm:$0xff] %vm390, %v1294
  %1355 = vst [vmem:[%s3 + $0x20] sm:$0xff] %v1295
  %1356 = vst.msk [vmem:[%s3 + $0x28] sm:$0xff] %vm390, %v1296
  %1357 = vst [vmem:[%s3 + $0x30] sm:$0xff] %v1297
  %1358 = vst.msk [vmem:[%s3 + $0x38] sm:$0xff] %vm390, %v1298
  %1359 = vst [vmem:[%s3 + $0x40] sm:$0xff] %v1299
  %1360 = vst.msk [vmem:[%s3 + $0x48] sm:$0xff] %vm390, %v1300
  %1361 = vst [vmem:[%s3 + $0x50] sm:$0xff] %v1301
  %1362 = vst.msk [vmem:[%s3 + $0x58] sm:$0xff] %vm390, %v1302
  %1363 = vst [vmem:[%s3 + $0x60] sm:$0xff] %v1303
  %1364 = vst.msk [vmem:[%s3 + $0x68] sm:$0xff] %vm390, %v1304
  %1365 = vst [vmem:[%s3 + $0x70] sm:$0xff] %v1305
  %1366 = vst.msk [vmem:[%s3 + $0x78] sm:$0xff] %vm390, %v1306
  %1367 = vst [vmem:[%s3 + $0x80] sm:$0xff] %v1307
  %1368 = vst.msk [vmem:[%s3 + $0x88] sm:$0xff] %vm390, %v1308
  %1369 = vst [vmem:[%s3 + $0x90] sm:$0xff] %v1309
  %1370 = vst.msk [vmem:[%s3 + $0x98] sm:$0xff] %vm390, %v1310
  %1371 = vst [vmem:[%s3 + $0xa0] sm:$0xff] %v1311
  %1372 = vst.msk [vmem:[%s3 + $0xa8] sm:$0xff] %vm390, %v1312
  %1373 = vst [vmem:[%s3 + $0xb0] sm:$0xff] %v1313
  %1374 = vst.msk [vmem:[%s3 + $0xb8] sm:$0xff] %vm390, %v1314
  %1375 = vst [vmem:[%s3 + $0xc0] sm:$0xff] %v1315
  %1376 = vst.msk [vmem:[%s3 + $0xc8] sm:$0xff] %vm390, %v1316
  %1377 = vst [vmem:[%s3 + $0xd0] sm:$0xff] %v1317
  %1378 = vst.msk [vmem:[%s3 + $0xd8] sm:$0xff] %vm390, %v1318
  %1379 = vst [vmem:[%s3 + $0xe0] sm:$0xff] %v1319
  %1380 = vst.msk [vmem:[%s3 + $0xe8] sm:$0xff] %vm390, %v1320
  %1381 = vst [vmem:[%s3 + $0xf0] sm:$0xff] %v1321
  %1382 = vst.msk [vmem:[%s3 + $0xf8] sm:$0xff] %vm390, %v1322
  %1383 = vst [vmem:[%s3 + $0x100] sm:$0xff] %v1323
  %1384 = vst.msk [vmem:[%s3 + $0x108] sm:$0xff] %vm390, %v1324
  %1385 = vst [vmem:[%s3 + $0x110] sm:$0xff] %v1325
  %1386 = vst.msk [vmem:[%s3 + $0x118] sm:$0xff] %vm390, %v1326
  %1387 = vst [vmem:[%s3 + $0x120] sm:$0xff] %v1327
  %1388 = vst.msk [vmem:[%s3 + $0x128] sm:$0xff] %vm390, %v1328
  %1389 = vst [vmem:[%s3 + $0x130] sm:$0xff] %v1329
  %1390 = vst.msk [vmem:[%s3 + $0x138] sm:$0xff] %vm390, %v1330
  %1391 = vst [vmem:[%s3 + $0x140] sm:$0xff] %v1331
  %1392 = vst.msk [vmem:[%s3 + $0x148] sm:$0xff] %vm390, %v1332
  %1393 = vst [vmem:[%s3 + $0x150] sm:$0xff] %v1333
  %1394 = vst.msk [vmem:[%s3 + $0x158] sm:$0xff] %vm390, %v1334
  %1395 = vst [vmem:[%s3 + $0x160] sm:$0xff] %v1335
  %1396 = vst.msk [vmem:[%s3 + $0x168] sm:$0xff] %vm390, %v1336
  %1397 = vst [vmem:[%s3 + $0x170] sm:$0xff] %v1337
  %1398 = vst.msk [vmem:[%s3 + $0x178] sm:$0xff] %vm390, %v1338
  %1399 = vst [vmem:[%s3 + $0x180] sm:$0xff] %v1339
  %1400 = vst.msk [vmem:[%s3 + $0x188] sm:$0xff] %vm390, %v1340
  %1401 = vst [vmem:[%s3 + $0x190] sm:$0xff] %v1341
  %1402 = vst.msk [vmem:[%s3 + $0x198] sm:$0xff] %vm390, %v1342
  %1403 = vst [vmem:[%s3 + $0x1a0] sm:$0xff] %v1343
  %1404 = vst.msk [vmem:[%s3 + $0x1a8] sm:$0xff] %vm390, %v1344
  %1405 = vst [vmem:[%s3 + $0x1b0] sm:$0xff] %v1345
  %1406 = vst.msk [vmem:[%s3 + $0x1b8] sm:$0xff] %vm390, %v1346
  %1407 = vst [vmem:[%s3 + $0x1c0] sm:$0xff] %v1347
  %1408 = vst.msk [vmem:[%s3 + $0x1c8] sm:$0xff] %vm390, %v1348
  %1409 = vst [vmem:[%s3 + $0x1d0] sm:$0xff] %v1349
  %1410 = vst.msk [vmem:[%s3 + $0x1d8] sm:$0xff] %vm390, %v1350
  // Predicated region
  $region14: #{conv_bn_forward.1} parent=0 // pred_check
    _
  $region15: #{conv_bn_forward.1} parent=0 // pred_check_branch
    %1412 = sbr.rel (0) target = $region17
  $region16: #{conv_bn_forward.1} parent=0 // pred_region
    _
  $region17: #{conv_bn_forward.1} parent=0 // pred_fallthru
    _
  // Predicated region
  $region18: #{conv_bn_forward.1} parent=0 // pred_check
    _
  $region19: #{conv_bn_forward.1} parent=0 // pred_check_branch
    %1414 = sbr.rel (0) target = $region21
  $region20: #{conv_bn_forward.1} parent=0 // pred_region
    _
  $region21: #{conv_bn_forward.1} parent=0 // pred_fallthru
    _

</llo_original>
